<compile_context>
chip_gen: v6e
topology: v6e:2x2x1
jax: 0.10.0
libtpu: 0.0.40
codegen_flags: <defaults>
</compile_context>

<pallas_src>
import numpy as np
import jax
import jax.numpy as jnp
from jax import lax
from jax.experimental import pallas as pl
from jax.experimental.pallas import tpu as pltpu


def _round_up(x: int, m: int) -> int:
    return ((x + m - 1) // m) * m


def _wcc_kernel(a_ref, b_ref, w_ref, out_ref, acc_ref):
    i = pl.program_id(1)          # tile index along the (reduction) sample axis

    @pl.when(i == 0)
    def _():
        acc_ref[...] = jnp.zeros_like(acc_ref)

    a = a_ref[...]                # (TS, Fp) y_true tile (compute dtype)
    b = b_ref[...]                # (TS, Fp) y_pred tile
    W = w_ref[...]                # (Fp, Fp) gaussian weight matrix (resident)

    ts = a.shape[0]
    # One fused MXU matmul: push W into the systolic array once for both operands.
    ab = jnp.concatenate([a, b], axis=0)                        # (2*TS, Fp)
    abw = jnp.dot(ab, W, preferred_element_type=jnp.float32)    # (2*TS, Fp) f32
    aw = abw[:ts]
    bw = abw[ts:]

    # f32 for the VPU elementwise path (v5e has no bf16 VPU; no-op for f32 inputs).
    af = a.astype(jnp.float32)
    bf = b.astype(jnp.float32)

    norm = jnp.sum(aw * bf, axis=1, keepdims=True)              # (TS, 1)
    norm1 = jnp.sum(aw * af, axis=1, keepdims=True)
    norm2 = jnp.sum(bw * bf, axis=1, keepdims=True)

    # rsqrt -> EUP slot; eps guard keeps all-zero (incl. padded) rows at sim == 0.
    denom2 = jnp.maximum(norm1 * norm2, jnp.float32(1e-12))
    sim = jnp.clip(norm * lax.rsqrt(denom2), 0.0, 1.0)          # (TS, 1)

    # On-chip accumulation across the reduction grid axis (no HBM round-trips).
    acc_ref[...] = acc_ref[...] + jnp.sum(sim, axis=0, keepdims=True)

    # Lane-dense per-chunk partial-sum output block (revisited; one HBM writeback per chunk).
    out_ref[...] = jnp.broadcast_to(acc_ref[...], out_ref.shape)


def _build_weight_matrix(n_features: int, n_padded: int,
                         gaussian_hwhm: float, dtype) -> jnp.ndarray:
    F = n_features
    width2 = gaussian_hwhm / np.sqrt(2.0 * np.log(2.0)) * 2.0
    p = (F - 1) // 2                       # PyTorch conv1d padding='same' left pad
    m = np.arange(n_padded)[:, None]
    k = np.arange(n_padded)[None, :]
    t = m - k + p                          # output position hit by (input m, tap k)
    de = F / 2.0 - t.astype(np.float64)
    w_t = np.exp(-de * de / (2.0 * width2))
    valid = (t >= 0) & (t < F) & (m < F) & (k < F)   # zero-pad region contributes 0
    W = np.where(valid, w_t, 0.0)
    return jnp.asarray(W, dtype=dtype)


def wcc_loss(y_true: jnp.ndarray, y_pred: jnp.ndarray,
             gaussian_hwhm: float = 10.0, *,
             compute_dtype=jnp.float32, num_core_chunks: int = 2) -> jnp.ndarray:
    assert y_true.shape == y_pred.shape and y_true.ndim == 2
    S, F = y_true.shape
    NC = max(1, int(num_core_chunks))
    Fp = _round_up(F, 128)                 # lane-dense feature axis
    isz = jnp.dtype(compute_dtype).itemsize

    rows_per_chunk = -(-S // NC)
    TS = min(_round_up(rows_per_chunk, 16), 256)   # 16-row multiple works for f32 & bf16

    # VMEM budget: 2 inputs x 2 pipeline buffers x tile + (double-buffered) W + out/scratch.
    def _footprint(ts):
        return (4 * ts * Fp * isz) + (2 * Fp * Fp * isz) + (2 * NC * 128 * 4) + (8 * 128 * 4)

    BUDGET = 40 * 1024 * 1024              # safe for v7x's 64 MiB physical VMEM
    while TS > 16 and _footprint(TS) > BUDGET:
        TS = max(16, _round_up(TS // 2, 16))
    # TODO(synk): for very large F (>= ~2048) the dense (Fp,Fp) weight matrix no longer
    # fits VMEM; exploit its ~25-tap banded Toeplitz structure (roll + FMA) instead.

    num_tiles = -(-rows_per_chunk // TS)
    Sp = NC * num_tiles * TS               # padded sample count (zero rows contribute 0)

    def _prep(x):
        return jnp.pad(x.astype(compute_dtype), ((0, Sp - S), (0, Fp - F)))

    a = _prep(y_true)
    b = _prep(y_pred)
    W = _build_weight_matrix(F, Fp, gaussian_hwhm, compute_dtype)

    vmem_limit = int(min(48 * 1024 * 1024, max(16 * 1024 * 1024, 2 * _footprint(TS))))

    partials = pl.pallas_call(
        _wcc_kernel,
        out_shape=jax.ShapeDtypeStruct((NC, 1, 128), jnp.float32),
        grid_spec=pltpu.PrefetchScalarGridSpec(
            num_scalar_prefetch=0,
            grid=(NC, num_tiles),
            in_specs=[
                pl.BlockSpec((TS, Fp), lambda c, i: (c * num_tiles + i, 0)),
                pl.BlockSpec((TS, Fp), lambda c, i: (c * num_tiles + i, 0)),
                pl.BlockSpec((Fp, Fp), lambda c, i: (0, 0)),     # W stays resident
            ],
            out_specs=pl.BlockSpec((1, 1, 128), lambda c, i: (c, 0, 0)),
            scratch_shapes=[pltpu.VMEM((1, 1), jnp.float32)],
        ),
        compiler_params=pltpu.CompilerParams(
            dimension_semantics=("parallel", "arbitrary"),
            vmem_limit_bytes=vmem_limit,
        ),
    )(a, b, W)

    sim_sum = jnp.sum(partials[:, 0, 0])
    return (1.0 - sim_sum / jnp.float32(S)).astype(jnp.float32)


def _reference_loss_numpy(a: np.ndarray, b: np.ndarray, hwhm: float) -> float:
    """Direct numpy transcription of the PyTorch forward (for verification)."""
    S, F = a.shape
    p = (F - 1) // 2
    width2 = hwhm / np.sqrt(2.0 * np.log(2.0)) * 2.0
    w = np.exp(-((F / 2.0 - np.arange(F)) ** 2) / (2.0 * width2))

    def corr(x, ker):
        out = np.zeros((S, F), dtype=np.float64)
        for i in range(S):
            for t in range(F):
                acc = 0.0
                for k in range(F):
                    m = t + k - p
                    if 0 <= m < F:
                        acc += x[i, m] * ker[i, k]
                out[i, t] = acc
        return out

    c = corr(a, b)
    c1 = corr(a, a)
    c2 = corr(b, b)
    norm = (c * w).sum(1)
    norm1 = (c1 * w).sum(1)
    norm2 = (c2 * w).sum(1)
    sim = np.clip(norm / np.sqrt(norm1 * norm2), 0.0, 1.0)
    return float(1.0 - sim.mean())


if __name__ == "__main__":
    GAUSSIAN_HWHM = 10.0          # module parameter (default fallback value)

    S, F = 8, 16                  # n_samples, n_features
    key = jax.random.PRNGKey(0)
    k1, k2 = jax.random.split(key)
    # Spectra are non-negative; keeps norm1*norm2 > 0 (same assumption as the ref).
    y_true = jax.random.uniform(k1, (S, F), dtype=jnp.float32)
    y_pred = jax.random.uniform(k2, (S, F), dtype=jnp.float32)

    ref = _reference_loss_numpy(np.asarray(y_true, dtype=np.float64),
                                np.asarray(y_pred, dtype=np.float64),
                                GAUSSIAN_HWHM)

    # f32 path (bit-accurate vs the reference transcription)
    loss = jax.block_until_ready(wcc_loss(y_true, y_pred, GAUSSIAN_HWHM))
    assert np.isfinite(float(loss)), "kernel produced non-finite loss"
    assert abs(float(loss) - ref) < 1e-4, f"f32 mismatch: pallas={float(loss)} ref={ref}"

    # bf16 fast path (halved HBM traffic / doubled MXU throughput) — looser tolerance.
    loss_bf16 = jax.block_until_ready(
        wcc_loss(y_true, y_pred, GAUSSIAN_HWHM, compute_dtype=jnp.bfloat16))
    assert np.isfinite(float(loss_bf16)), "bf16 kernel produced non-finite loss"
    assert abs(float(loss_bf16) - ref) < 5e-2, \
        f"bf16 mismatch: pallas={float(loss_bf16)} ref={ref}"

    print("KERNEL_OK")
</pallas_src>

<mosaic_0001>
module attributes {stable_mosaic.version = 11 : i64} {
  func.func @_wcc_kernel(%arg0: i32, %arg1: i32, %arg2: memref<16x128xf32, #tpu.memory_space<vmem>>, %arg3: memref<16x128xf32, #tpu.memory_space<vmem>>, %arg4: memref<128x128xf32, #tpu.memory_space<vmem>>, %arg5: memref<1x1x128xf32, #tpu.memory_space<vmem>>, %arg6: memref<1x1xf32, #tpu.memory_space<vmem>>) attributes {dimension_semantics = [#tpu.dimension_semantics<parallel>, #tpu.dimension_semantics<arbitrary>], iteration_bounds = array<i64: 2, 1>, scalar_prefetch = 0 : i64, scratch_operands = 1 : i64, tpu.core_type = #tpu.core_type<tc>, window_params = [{transform_indices = @transform_0, window_bounds = array<i64: 16, 128>}, {transform_indices = @transform_1, window_bounds = array<i64: 16, 128>}, {pipeline_mode = #tpu.pipeline_mode<synchronous>, transform_indices = @transform_2, window_bounds = array<i64: 128, 128>}, {transform_indices = @transform_3, window_bounds = array<i64: 1, 1, 128>}]} {
    %c0_i32 = arith.constant 0 : i32
    %0 = arith.cmpi eq, %arg1, %c0_i32 : i32
    %1 = arith.extui %0 : i1 to i32
    %c0_i32_0 = arith.constant 0 : i32
    %2 = arith.cmpi ne, %1, %c0_i32_0 : i32
    scf.if %2 {
      %cst_22 = arith.constant 0.000000e+00 : f32
      %37 = vector.broadcast %cst_22 : f32 to vector<1x1xf32>
      %c0_23 = arith.constant 0 : index
      %c0_24 = arith.constant 0 : index
      %38 = vector.load %arg6[%c0_23, %c0_24] : memref<1x1xf32, #tpu.memory_space<vmem>>, vector<1x1xf32>
      tpu.vector_store %arg6[%c0_23, %c0_24], %37 {strides = array<i32>} : memref<1x1xf32, #tpu.memory_space<vmem>>, vector<1x1xf32>,
    } else {
    }
    %c0 = arith.constant 0 : index
    %c0_1 = arith.constant 0 : index
    %3 = vector.load %arg2[%c0, %c0_1] : memref<16x128xf32, #tpu.memory_space<vmem>>, vector<16x128xf32>
    %c0_2 = arith.constant 0 : index
    %c0_3 = arith.constant 0 : index
    %4 = vector.load %arg3[%c0_2, %c0_3] : memref<16x128xf32, #tpu.memory_space<vmem>>, vector<16x128xf32>
    %c0_4 = arith.constant 0 : index
    %c0_5 = arith.constant 0 : index
    %5 = vector.load %arg4[%c0_4, %c0_5] : memref<128x128xf32, #tpu.memory_space<vmem>>, vector<128x128xf32>
    %6 = tpu.concatenate %3, %4 in 0 : vector<16x128xf32>, vector<16x128xf32> -> vector<32x128xf32>
    %cst = arith.constant dense<0.000000e+00> : vector<32x128xf32>
    %7 = tpu.matmul %6, %5, %cst {dimension_numbers = #tpu.dot_dimension_numbers<[1], [0], [0], [1], [0, 0, 1, 1], [], []>} : vector<32x128xf32>, vector<128x128xf32>, vector<32x128xf32> -> vector<32x128xf32>
    %8 = vector.extract_strided_slice %7 {offsets = [0, 0], sizes = [16, 128], strides = [1, 1]} : vector<32x128xf32> to vector<16x128xf32>
    %9 = vector.extract_strided_slice %7 {offsets = [16, 0], sizes = [16, 128], strides = [1, 1]} : vector<32x128xf32> to vector<16x128xf32>
    %10 = arith.mulf %8, %4 : vector<16x128xf32>
    %cst_6 = arith.constant dense<0.000000e+00> : vector<16xf32>
    %11 = vector.multi_reduction <add>, %10, %cst_6 [1] : vector<16x128xf32> to vector<16xf32>
    %12 = vector.shape_cast %11 : vector<16xf32> to vector<16x1xf32>
    %13 = arith.mulf %8, %3 : vector<16x128xf32>
    %cst_7 = arith.constant dense<0.000000e+00> : vector<16xf32>
    %14 = vector.multi_reduction <add>, %13, %cst_7 [1] : vector<16x128xf32> to vector<16xf32>
    %15 = vector.shape_cast %14 : vector<16xf32> to vector<16x1xf32>
    %16 = arith.mulf %9, %4 : vector<16x128xf32>
    %cst_8 = arith.constant dense<0.000000e+00> : vector<16xf32>
    %17 = vector.multi_reduction <add>, %16, %cst_8 [1] : vector<16x128xf32> to vector<16xf32>
    %18 = vector.shape_cast %17 : vector<16xf32> to vector<16x1xf32>
    %19 = arith.mulf %15, %18 : vector<16x1xf32>
    %cst_9 = arith.constant 9.99999996E-13 : f32
    %20 = vector.broadcast %cst_9 : f32 to vector<16x1xf32>
    %21 = arith.maximumf %19, %20 : vector<16x1xf32>
    %22 = math.rsqrt %21 : vector<16x1xf32>
    %23 = arith.mulf %12, %22 : vector<16x1xf32>
    %cst_10 = arith.constant 0.000000e+00 : f32
    %cst_11 = arith.constant 1.000000e+00 : f32
    %24 = vector.broadcast %cst_10 : f32 to vector<16x1xf32>
    %25 = arith.maximumf %24, %23 : vector<16x1xf32>
    %26 = vector.broadcast %cst_11 : f32 to vector<16x1xf32>
    %27 = arith.minimumf %26, %25 : vector<16x1xf32>
    %c0_12 = arith.constant 0 : index
    %c0_13 = arith.constant 0 : index
    %28 = vector.load %arg6[%c0_12, %c0_13] : memref<1x1xf32, #tpu.memory_space<vmem>>, vector<1x1xf32>
    %cst_14 = arith.constant dense<0.000000e+00> : vector<1xf32>
    %29 = vector.multi_reduction <add>, %27, %cst_14 [0] : vector<16x1xf32> to vector<1xf32>
    %30 = vector.shape_cast %29 : vector<1xf32> to vector<1x1xf32>
    %31 = arith.addf %28, %30 : vector<1x1xf32>
    %c0_15 = arith.constant 0 : index
    %c0_16 = arith.constant 0 : index
    %32 = vector.load %arg6[%c0_15, %c0_16] : memref<1x1xf32, #tpu.memory_space<vmem>>, vector<1x1xf32>
    tpu.vector_store %arg6[%c0_15, %c0_16], %31 {strides = array<i32>} : memref<1x1xf32, #tpu.memory_space<vmem>>, vector<1x1xf32>,
    %c0_17 = arith.constant 0 : index
    %c0_18 = arith.constant 0 : index
    %33 = vector.load %arg6[%c0_17, %c0_18] : memref<1x1xf32, #tpu.memory_space<vmem>>, vector<1x1xf32>
    %34 = vector.shape_cast %33 : vector<1x1xf32> to vector<1x1x1xf32>
    %35 = vector.broadcast %34 : vector<1x1x1xf32> to vector<1x1x128xf32>
    %c0_19 = arith.constant 0 : index
    %c0_20 = arith.constant 0 : index
    %c0_21 = arith.constant 0 : index
    %36 = vector.load %arg5[%c0_19, %c0_20, %c0_21] : memref<1x1x128xf32, #tpu.memory_space<vmem>>, vector<1x1x128xf32>
    tpu.vector_store %arg5[%c0_19, %c0_20, %c0_21], %35 {strides = array<i32>} : memref<1x1x128xf32, #tpu.memory_space<vmem>>, vector<1x1x128xf32>,
    return
  }
  func.func @transform_0(%arg0: i32, %arg1: i32) -> (i32, i32) {
    %c1_i32 = arith.constant 1 : i32
    %0 = arith.muli %arg0, %c1_i32 : i32
    %1 = arith.addi %0, %arg1 : i32
    %c0_i32 = arith.constant 0 : i32
    %c0_i32_0 = arith.constant 0 : i32
    return %1, %c0_i32 : i32, i32
  }
  func.func @transform_1(%arg0: i32, %arg1: i32) -> (i32, i32) {
    %c1_i32 = arith.constant 1 : i32
    %0 = arith.muli %arg0, %c1_i32 : i32
    %1 = arith.addi %0, %arg1 : i32
    %c0_i32 = arith.constant 0 : i32
    %c0_i32_0 = arith.constant 0 : i32
    return %1, %c0_i32 : i32, i32
  }
  func.func @transform_2(%arg0: i32, %arg1: i32) -> (i32, i32) {
    %c0_i32 = arith.constant 0 : i32
    %c0_i32_0 = arith.constant 0 : i32
    %c0_i32_1 = arith.constant 0 : i32
    return %c0_i32, %c0_i32_0 : i32, i32
  }
  func.func @transform_3(%arg0: i32, %arg1: i32) -> (i32, i32, i32) {
    %c0_i32 = arith.constant 0 : i32
    %c0_i32_0 = arith.constant 0 : i32
    %c0_i32_1 = arith.constant 0 : i32
    return %arg0, %c0_i32, %c0_i32_0 : i32, i32, i32
  }
}

</mosaic_0001>

<llo_original>
// kernel: tpu_custom_call.1
$region0: #{tpu_custom_call.1}
  #allocation0 [shape = 'u32[]', space=smem, size = 0x4, offset = 0x4, fixed_abs, tag = 'smem constant byte address 0x4 - core index']
  #allocation1 [shape = 'u32[144,128]{1,0:T(1,128)}', space=vmem, size = 0x12000, scoped, tag = 'internal scratch']
  #allocation2 [shape = 'f32[1,1]{1,0:T(1,128)}', space=vmem, size = 0x200, scoped, tag = 'scratch operand']
  %s0 = inlined_call_operand.hbm [shape: f32[32,128], index: 0, kind: input, shape index: {}]
  %s1 = inlined_call_operand.hbm [shape: f32[32,128], index: 1, kind: input, shape index: {}]
  %s2 = inlined_call_operand.hbm [shape: f32[128,128], index: 2, kind: input, shape index: {}]
  %s3 = inlined_call_operand.hbm [shape: f32[2,1,128], index: 3, kind: output, shape index: {}]
  %s4 = sld [smem:[#allocation0]]
  $region61: #{tpu_custom_call.1} parent=0
    _
  %s6 = ssub.s32 1, %s4
  %s7 = scalar_select 0, %s6, %s4
  $region1: #{tpu_custom_call.1} parent=0
    #allocation3 [shape = 'u8[16384]{0}', space=vmem, size = 0x4000, scoped, tag = 'input window, operand 0']
    #allocation4 [shape = 's32[2]{0}', space=sflag, size = 0x8, scoped, tag = 'scoped memory for tpu_custom_call.1']
    #allocation5 [shape = 's32[2]{0}', space=sflag, size = 0x8, scoped, tag = 'scoped memory for tpu_custom_call.1']
    #allocation6 [shape = 'u8[16384]{0}', space=vmem, size = 0x4000, scoped, tag = 'input window, operand 1']
    #allocation7 [shape = 's32[2]{0}', space=sflag, size = 0x8, scoped, tag = 'scoped memory for tpu_custom_call.1']
    #allocation8 [shape = 'u8[65536]{0}', space=vmem, size = 0x10000, scoped, tag = 'input window, operand 2, single buffered']
    #allocation9 [shape = 'u8[1024]{0}', space=vmem, size = 0x400, scoped, tag = 'output window, operand 0']
    %8 = vsyncpa [#allocation4], 0
    %s9 = scalar_lea.sflag [#allocation4], 1
    %10 = vsyncpa %s9, 0
    %11 = vsyncpa [#allocation7], 0
    %s12 = scalar_lea.sflag [#allocation7], 1
    %13 = vsyncpa %s12, 0
    %14 = vsyncpa [#allocation5], 0
    %s15 = scalar_lea.sflag [#allocation5], 1
    %16 = vsyncpa %s15, 0
    loop: start=0, step=1, limit=4
    $region2: #{tpu_custom_call.1} parent=1 // loop_pre_header
      _
    $region3: #{tpu_custom_call.1} parent=1 // loop_header
      %s18 = sphi 0, %s22
      %p19 = scmp.ge.s32.totalorder %s18, 4
      %s25 = sphi 0, %s37
      %s26 = sphi 0, %s33
      %s27 = sphi 0, %s25
      %s28 = sphi 0, %s26
      %s29 = sphi 0, %s27
      %s30 = sphi 0, %s28
      %s42 = sphi 0, %s44
      %s45 = sphi 0, %s42
      %s46 = sphi 0, %s45
      %s62 = sphi 0, %s46
      %s70 = sphi 0, %s72
      %s73 = sphi 0, %s70
      %s74 = sphi 0, %s73
      %s90 = sphi 0, %s74
      %s94 = sphi 0, %s94
      %s96 = sphi 0, %s94
      %s97 = sphi 0, %s96
      %s111 = sphi 0, %s97
      %s117 = sphi 0, %s119
      %s120 = sphi 0, %s117
      %s121 = sphi 0, %s120
      %s137 = sphi 0, %s121
    $region4: #{tpu_custom_call.1} parent=1 // loop_header_branch
      %21 = sbr.rel (%p19) target = $region8
    $region5: #{tpu_custom_call.1} parent=1 // loop_body
      %s23 = ssub.s32 %s18, 1
      %s24 = ssub.s32 %s18, 2
      %s31 = sadd.s32 1, %s26
      %p32 = scmp.ge.s32.totalorder %s31, 1
      %s33 = scalar_select %p32, 0, %s31
      %s34 = sadd.s32 1, %s25
      %s35 = scalar_select %p32, %s34, %s25
      %p36 = scmp.ge.s32.totalorder %s35, 2
      %s37 = scalar_select %p36, 0, %s35
      %s38 = sadd.s32 %s25, %s26
      %s39 = sadd.s32 %s37, %s33
      %s40 = ssub.s32 %s38, %s39
      %p41 = scmp.eq.s32.totalorder %s40, 0
      %s43 = sadd.s32 %s42, 1
      %s44 = scalar_select %p41, %s42, %s43
      %p47 = pneg %p41
      %p48 = scmp.eq.s32.totalorder %s18, 1
      %p49 = por %p47, %p48
      %p50 = scmp.ne.s32.totalorder %s42, %s45
      %p51 = scmp.eq.s32.totalorder %s18, 0
      %p52 = por %p50, %p51
      %p53 = scmp.ne.s32.totalorder %s42, %s45
      %p54 = scmp.eq.s32.totalorder %s23, 1
      %p55 = por %p53, %p54
      %p56 = scmp.ne.s32.totalorder %s45, %s46
      %p57 = scmp.eq.s32.totalorder %s23, 0
      %p58 = por %p56, %p57
      %p59 = scmp.ne.s32.totalorder %s45, %s46
      %p60 = scmp.eq.s32.totalorder %s24, 1
      %p61 = por %p59, %p60
      %p63 = scmp.ne.s32.totalorder %s46, %s62
      %p64 = scmp.eq.s32.totalorder %s24, 0
      %p65 = por %p63, %p64
      %s66 = sadd.s32 %s25, %s26
      %s67 = sadd.s32 %s37, %s33
      %s68 = ssub.s32 %s66, %s67
      %p69 = scmp.eq.s32.totalorder %s68, 0
      %s71 = sadd.s32 %s70, 1
      %s72 = scalar_select %p69, %s70, %s71
      %p75 = pneg %p69
      %p76 = scmp.eq.s32.totalorder %s18, 1
      %p77 = por %p75, %p76
      %p78 = scmp.ne.s32.totalorder %s70, %s73
      %p79 = scmp.eq.s32.totalorder %s18, 0
      %p80 = por %p78, %p79
      %p81 = scmp.ne.s32.totalorder %s70, %s73
      %p82 = scmp.eq.s32.totalorder %s23, 1
      %p83 = por %p81, %p82
      %p84 = scmp.ne.s32.totalorder %s73, %s74
      %p85 = scmp.eq.s32.totalorder %s23, 0
      %p86 = por %p84, %p85
      %p87 = scmp.ne.s32.totalorder %s73, %s74
      %p88 = scmp.eq.s32.totalorder %s24, 1
      %p89 = por %p87, %p88
      %p91 = scmp.ne.s32.totalorder %s74, %s90
      %p92 = scmp.eq.s32.totalorder %s24, 0
      %p93 = por %p91, %p92
      %s95 = sadd.s32 %s94, 1
      %p98 = scmp.eq.s32.totalorder %s18, 1
      %p99 = scmp.ne.s32.totalorder %s94, %s96
      %p100 = scmp.eq.s32.totalorder %s18, 0
      %p101 = por %p99, %p100
      %p102 = scmp.ne.s32.totalorder %s94, %s96
      %p103 = scmp.eq.s32.totalorder %s23, 1
      %p104 = por %p102, %p103
      %p105 = scmp.ne.s32.totalorder %s96, %s97
      %p106 = scmp.eq.s32.totalorder %s23, 0
      %p107 = por %p105, %p106
      %p108 = scmp.ne.s32.totalorder %s96, %s97
      %p109 = scmp.eq.s32.totalorder %s24, 1
      %p110 = por %p108, %p109
      %p112 = scmp.ne.s32.totalorder %s97, %s111
      %p113 = scmp.eq.s32.totalorder %s24, 0
      %p114 = por %p112, %p113
      %s115 = ssub.s32 %s25, %s37
      %p116 = scmp.eq.s32.totalorder %s115, 0
      %s118 = sadd.s32 %s117, 1
      %s119 = scalar_select %p116, %s117, %s118
      %p122 = pneg %p116
      %p123 = scmp.eq.s32.totalorder %s18, 1
      %p124 = por %p122, %p123
      %p125 = scmp.ne.s32.totalorder %s117, %s120
      %p126 = scmp.eq.s32.totalorder %s18, 0
      %p127 = por %p125, %p126
      %p128 = scmp.ne.s32.totalorder %s117, %s120
      %p129 = scmp.eq.s32.totalorder %s23, 1
      %p130 = por %p128, %p129
      %p131 = scmp.ne.s32.totalorder %s120, %s121
      %p132 = scmp.eq.s32.totalorder %s23, 0
      %p133 = por %p131, %p132
      %p134 = scmp.ne.s32.totalorder %s120, %s121
      %p135 = scmp.eq.s32.totalorder %s24, 1
      %p136 = por %p134, %p135
      %p138 = scmp.ne.s32.totalorder %s121, %s137
      %p139 = scmp.eq.s32.totalorder %s24, 0
      %p140 = por %p138, %p139
      %p141 = scmp.le.s32.totalorder 1, %s18
      %p142 = scmp.lt.s32.totalorder %s18, 3
      %p143 = pnand %p141, %p142
      %p144 = pneg %p143
      // Predicated region
      $region9: #{tpu_custom_call.1} parent=5 // pred_check
        _
      $region10: #{tpu_custom_call.1} parent=5 // pred_check_branch
        %146 = sbr.rel (%p143) target = $region12
      $region11: #{tpu_custom_call.1} parent=5 // pred_region
        %s147 = ssub.s32 %s18, 1
        // Predicated region
        $region13: #{tpu_custom_call.1} parent=11 // pred_check
          %p148 = pneg %p107
        $region14: #{tpu_custom_call.1} parent=11 // pred_check_branch
          %150 = sbr.rel (%p148) target = $region16
        $region15: #{tpu_custom_call.1} parent=11 // pred_region
          %s152 = ssub.s32 2048, 2048
          %153 = vsyncadd [#allocation7], %s152
          %s154 = sshll.u32 [#allocation8], 4
          %s155 = int_to_ptr.vmem [resolvable:$true] %s154
          %160 = dma.hbm_to_vmem [thread:$0]  %s2, 2048, %s155, [#allocation7], 128, 128, 8
        $region16: #{tpu_custom_call.1} parent=11 // pred_fallthru
          _
      $region12: #{tpu_custom_call.1} parent=5 // pred_fallthru
        _
      %p161 = scmp.lt.s32.totalorder %s18, 2
      // Predicated region
      $region17: #{tpu_custom_call.1} parent=5 // pred_check
        %p162 = pneg %p161
      $region18: #{tpu_custom_call.1} parent=5 // pred_check_branch
        %164 = sbr.rel (%p162) target = $region20
      $region19: #{tpu_custom_call.1} parent=5 // pred_region
        // Predicated region
        $region21: #{tpu_custom_call.1} parent=19 // pred_check
          %p165 = pneg %p52
        $region22: #{tpu_custom_call.1} parent=19 // pred_check_branch
          %167 = sbr.rel (%p165) target = $region24
        $region23: #{tpu_custom_call.1} parent=19 // pred_region
          %s168 = sand.u32 %s42, 1
          %s169 = scalar_lea.sflag [#allocation4], %s168
          %s170 = sand.u32 %s42, 1
          %s171 = smul.addr %s170, 16
          %s172 = scalar_lea.vmem [#allocation3], %s171
          %s173 = sadd.s32 %s25, %s26
          %s174 = smul.u32 2, %s173
          %s176 = ssub.s32 256, 256
          %177 = vsyncadd %s169, %s176
          %s178 = smul.addr %s174, 128
          %s179 = scalar_lea.hbm %s0, %s178
          %s180 = sshll.u32 %s172, 4
          %s181 = int_to_ptr.vmem [resolvable:$true] %s180
          %186 = dma.hbm_to_vmem [thread:$0]  %s179, 256, %s181, %s169, 128, 128, 8
        $region24: #{tpu_custom_call.1} parent=19 // pred_fallthru
          _
        // Predicated region
        $region25: #{tpu_custom_call.1} parent=19 // pred_check
          %p187 = pneg %p80
        $region26: #{tpu_custom_call.1} parent=19 // pred_check_branch
          %189 = sbr.rel (%p187) target = $region28
        $region27: #{tpu_custom_call.1} parent=19 // pred_region
          %s190 = sand.u32 %s18, 1
          %s191 = scalar_lea.sflag [#allocation7], %s190
          %s192 = sand.u32 %s70, 1
          %s193 = smul.addr %s192, 16
          %s194 = scalar_lea.vmem [#allocation6], %s193
          %s195 = sadd.s32 %s25, %s26
          %s196 = smul.u32 2, %s195
          %s198 = ssub.s32 256, 256
          %199 = vsyncadd %s191, %s198
          %s200 = smul.addr %s196, 128
          %s201 = scalar_lea.hbm %s1, %s200
          %s202 = sshll.u32 %s194, 4
          %s203 = int_to_ptr.vmem [resolvable:$true] %s202
          %208 = dma.hbm_to_vmem [thread:$0]  %s201, 256, %s203, %s191, 128, 128, 8
        $region28: #{tpu_custom_call.1} parent=19 // pred_fallthru
          _
      $region20: #{tpu_custom_call.1} parent=5 // pred_fallthru
        _
      %p209 = scmp.le.s32.totalorder 1, %s18
      %p210 = scmp.lt.s32.totalorder %s18, 3
      %p211 = pnand %p209, %p210
      %p212 = pneg %p211
      // Predicated region
      $region29: #{tpu_custom_call.1} parent=5 // pred_check
        _
      $region30: #{tpu_custom_call.1} parent=5 // pred_check_branch
        %214 = sbr.rel (%p211) target = $region32
      $region31: #{tpu_custom_call.1} parent=5 // pred_region
        %s215 = ssub.s32 %s18, 1
        %s216 = sand.u32 %s45, 1
        %s217 = scalar_lea.sflag [#allocation4], %s216
        %s218 = sand.u32 %s45, 1
        %s219 = smul.addr %s218, 16
        %s220 = scalar_lea.vmem [#allocation3], %s219
        // Predicated region
        $region33: #{tpu_custom_call.1} parent=31 // pred_check
          %p221 = pneg %p58
        $region34: #{tpu_custom_call.1} parent=31 // pred_check_branch
          %223 = sbr.rel (%p221) target = $region36
        $region35: #{tpu_custom_call.1} parent=31 // pred_region
          %224 = dma.done %s217, 256
        $region36: #{tpu_custom_call.1} parent=31 // pred_fallthru
          _
        %s225 = sand.u32 %s23, 1
        %s226 = scalar_lea.sflag [#allocation7], %s225
        %s227 = sand.u32 %s73, 1
        %s228 = smul.addr %s227, 16
        %s229 = scalar_lea.vmem [#allocation6], %s228
        // Predicated region
        $region37: #{tpu_custom_call.1} parent=31 // pred_check
          %p230 = pneg %p86
        $region38: #{tpu_custom_call.1} parent=31 // pred_check_branch
          %232 = sbr.rel (%p230) target = $region40
        $region39: #{tpu_custom_call.1} parent=31 // pred_region
          %233 = dma.done %s226, 256
        $region40: #{tpu_custom_call.1} parent=31 // pred_fallthru
          _
        // Predicated region
        $region41: #{tpu_custom_call.1} parent=31 // pred_check
          %p234 = pneg %p107
        $region42: #{tpu_custom_call.1} parent=31 // pred_check_branch
          %236 = sbr.rel (%p234) target = $region44
        $region43: #{tpu_custom_call.1} parent=31 // pred_region
          %237 = dma.done [#allocation7], 2048
        $region44: #{tpu_custom_call.1} parent=31 // pred_fallthru
          _
        %s238 = sand.u32 %s45, 1
        %s239 = scalar_lea.sflag [#allocation4], %s238
        %s240 = sand.u32 %s45, 1
        %s241 = smul.addr %s240, 16
        %s242 = scalar_lea.vmem [#allocation3], %s241
        %p243 = pneg %p58
        %p244 = pneg %p55
        %s245 = sand.u32 %s23, 1
        %s246 = scalar_lea.sflag [#allocation7], %s245
        %s247 = sand.u32 %s73, 1
        %s248 = smul.addr %s247, 16
        %s249 = scalar_lea.vmem [#allocation6], %s248
        %p250 = pneg %p86
        %p251 = pneg %p83
        %p252 = pneg %p107
        %p253 = pneg %p104
        %p254 = pneg %p133
        %p255 = pneg %p130
        %s256 = sand.u32 %s120, 1
        %s257 = scalar_lea.sflag [#allocation5], %s256
        %s258 = sand.u32 %s120, 1
        %s259 = scalar_lea.vmem [#allocation9], %s258
        %s260 = sadd.s32 %s27, %s28
        %s261 = smul.u32 2, %s260
        %s262 = sadd.s32 %s27, %s28
        %s263 = smul.u32 2, %s262
        %p264 = scmp.eq.s32.totalorder %s28, 0
        // Predicated region
        $region45: #{tpu_custom_call.1} parent=31 // pred_check
          %p265 = pneg %p264
        $region46: #{tpu_custom_call.1} parent=31 // pred_check_branch
          %267 = sbr.rel (%p265) target = $region48
        $region47: #{tpu_custom_call.1} parent=31 // pred_region
          %vm268 = vcmask 0
          %269 = vst.msk [vmem:[#allocation2] sm:$0x1] %vm268, 0.0
        $region48: #{tpu_custom_call.1} parent=31 // pred_fallthru
          _
        %v270 = vld [vmem:[%s220] sm:$0xff]
        %v271 = vld [vmem:[%s220 + $0x8] sm:$0xff]
        %v272 = vld [vmem:[%s229] sm:$0xff]
        %v273 = vld [vmem:[%s229 + $0x8] sm:$0xff]
        %v274 = vld [vmem:[#allocation8] sm:$0xff]
        %v275 = vld [vmem:[#allocation8 + $0x8] sm:$0xff]
        %v276 = vld [vmem:[#allocation8 + $0x10] sm:$0xff]
        %v277 = vld [vmem:[#allocation8 + $0x18] sm:$0xff]
        %v278 = vld [vmem:[#allocation8 + $0x20] sm:$0xff]
        %v279 = vld [vmem:[#allocation8 + $0x28] sm:$0xff]
        %v280 = vld [vmem:[#allocation8 + $0x30] sm:$0xff]
        %v281 = vld [vmem:[#allocation8 + $0x38] sm:$0xff]
        %v282 = vld [vmem:[#allocation8 + $0x40] sm:$0xff]
        %v283 = vld [vmem:[#allocation8 + $0x48] sm:$0xff]
        %v284 = vld [vmem:[#allocation8 + $0x50] sm:$0xff]
        %v285 = vld [vmem:[#allocation8 + $0x58] sm:$0xff]
        %v286 = vld [vmem:[#allocation8 + $0x60] sm:$0xff]
        %v287 = vld [vmem:[#allocation8 + $0x68] sm:$0xff]
        %v288 = vld [vmem:[#allocation8 + $0x70] sm:$0xff]
        %v289 = vld [vmem:[#allocation8 + $0x78] sm:$0xff]
        %290 = vmatprep.subr.mxu0 0.0
        %291 = vmatpush1.msra.mxu0 %v289
        %292 = vmatprep.subr.mxu0 0.0
        %293 = vmatpush1.msra.mxu0 %v288
        %294 = vmatprep.subr.mxu0 0.0
        %295 = vmatpush1.msra.mxu0 %v287
        %296 = vmatprep.subr.mxu0 0.0
        %297 = vmatpush1.msra.mxu0 %v286
        %298 = vmatprep.subr.mxu0 0.0
        %299 = vmatpush1.msra.mxu0 %v285
        %300 = vmatprep.subr.mxu0 0.0
        %301 = vmatpush1.msra.mxu0 %v284
        %302 = vmatprep.subr.mxu0 0.0
        %303 = vmatpush1.msra.mxu0 %v283
        %304 = vmatprep.subr.mxu0 0.0
        %305 = vmatpush1.msra.mxu0 %v282
        %306 = vmatprep.subr.mxu0 0.0
        %307 = vmatpush1.msra.mxu0 %v281
        %308 = vmatprep.subr.mxu0 0.0
        %309 = vmatpush1.msra.mxu0 %v280
        %310 = vmatprep.subr.mxu0 0.0
        %311 = vmatpush1.msra.mxu0 %v279
        %312 = vmatprep.subr.mxu0 0.0
        %313 = vmatpush1.msra.mxu0 %v278
        %314 = vmatprep.subr.mxu0 0.0
        %315 = vmatpush1.msra.mxu0 %v277
        %316 = vmatprep.subr.mxu0 0.0
        %317 = vmatpush1.msra.mxu0 %v276
        %318 = vmatprep.subr.mxu0 0.0
        %319 = vmatpush1.msra.mxu0 %v275
        %320 = vmatprep.subr.mxu0 0.0
        %321 = vmatpush1.msra.mxu0 %v274
        %322 = vmatprep.subr.mxu0 0.0
        %323 = vmatpush2.msra.mxu0 0.0
        %324 = vmatprep.subr.mxu0 0.0
        %325 = vmatpush2.msra.mxu0 0.0
        %326 = vmatprep.subr.mxu0 0.0
        %327 = vmatpush2.msra.mxu0 0.0
        %328 = vmatprep.subr.mxu0 0.0
        %329 = vmatpush2.msra.mxu0 0.0
        %330 = vmatprep.subr.mxu0 0.0
        %331 = vmatpush2.msra.mxu0 0.0
        %332 = vmatprep.subr.mxu0 0.0
        %333 = vmatpush2.msra.mxu0 0.0
        %334 = vmatprep.subr.mxu0 0.0
        %335 = vmatpush2.msra.mxu0 0.0
        %336 = vmatprep.subr.mxu0 0.0
        %337 = vmatpush2.msra.mxu0 0.0
        %338 = vmatprep.subr.mxu0 0.0
        %339 = vmatpush2.msra.mxu0 0.0
        %340 = vmatprep.subr.mxu0 0.0
        %341 = vmatpush2.msra.mxu0 0.0
        %342 = vmatprep.subr.mxu0 0.0
        %343 = vmatpush2.msra.mxu0 0.0
        %344 = vmatprep.subr.mxu0 0.0
        %345 = vmatpush2.msra.mxu0 0.0
        %346 = vmatprep.subr.mxu0 0.0
        %347 = vmatpush2.msra.mxu0 0.0
        %348 = vmatprep.subr.mxu0 0.0
        %349 = vmatpush2.msra.mxu0 0.0
        %350 = vmatprep.subr.mxu0 0.0
        %351 = vmatpush2.msra.mxu0 0.0
        %352 = vmatprep.subr.mxu0 0.0
        %353 = vmatpush2.msra.mxu0 0.0
        %354 = vmatprep.mubr.f32.mxu0 0.0
        %355 = vmatmul.mubr.f32.gmra.mxu0 %v270
        %v356 = vpop.f32.mrf.mxu0
        %v357 = vadd.f32 0.0, %v356
        %v358 = vpop.f32.mrf.mxu0
        %359 = vmatprep.mubr.f32.mxu0 0.0
        %360 = vmatmul.mubr.f32.gmra.mxu0 %v271
        %v361 = vpop.f32.mrf.mxu0
        %v362 = vadd.f32 0.0, %v361
        %v363 = vpop.f32.mrf.mxu0
        %364 = vmatprep.mubr.f32.mxu0 0.0
        %365 = vmatmul.mubr.f32.gmra.mxu0 %v272
        %v366 = vpop.f32.mrf.mxu0
        %v367 = vadd.f32 0.0, %v366
        %v368 = vpop.f32.mrf.mxu0
        %369 = vmatprep.mubr.f32.mxu0 0.0
        %370 = vmatmul.mubr.f32.gmra.mxu0 %v273
        %v371 = vpop.f32.mrf.mxu0
        %v372 = vadd.f32 0.0, %v371
        %v373 = vpop.f32.mrf.mxu0
        %374 = vdwg.mxu0
        %v375 = vmul.f32 %v357, %v272
        %v376 = vmul.f32 %v362, %v273
        %377 = vadd.xlane.f32.xlu0 %v375
        %v378 = vpop.xlane.xlu0 %377
        %379 = vadd.xlane.f32.xlu0 %v376
        %v380 = vpop.xlane.xlu0 %379
        %v381 = vmul.f32 %v357, %v270
        %v382 = vmul.f32 %v362, %v271
        %383 = vadd.xlane.f32.xlu0 %v381
        %v384 = vpop.xlane.xlu0 %383
        %385 = vadd.xlane.f32.xlu0 %v382
        %v386 = vpop.xlane.xlu0 %385
        %v387 = vmul.f32 %v367, %v272
        %v388 = vmul.f32 %v372, %v273
        %389 = vadd.xlane.f32.xlu0 %v387
        %v390 = vpop.xlane.xlu0 %389
        %391 = vadd.xlane.f32.xlu0 %v388
        %v392 = vpop.xlane.xlu0 %391
        %v393 = vmul.f32 %v384, %v390
        %v394 = vmul.f32 %v386, %v392
        %v395 = vmax.f32 %v393, 1e-12
        %v396 = vmax.f32 %v394, 1e-12
        %v397 = vrsqrt.pop %v395
        %v398 = vrsqrt.pop %v396
        %v399 = vmul.f32 %v378, %v397
        %v400 = vmul.f32 %v380, %v398
        %v401 = vmax.f32 %v399, 0.0
        %v402 = vmax.f32 %v400, 0.0
        %v403 = vmin.f32 %v401, 1.0
        %v404 = vmin.f32 %v402, 1.0
        %v405 = vld [vmem:[#allocation2] sm:$0x1]
        %v406 = vadd.f32 %v403, %v404
        %v407 = vrot.slane %v406, 4
        %v408 = vadd.f32 %v406, %v407
        %v409 = vrot.slane %v408, 2
        %v410 = vadd.f32 %v408, %v409
        %v411 = vrot.slane %v410, 1
        %v412 = vadd.f32 %v410, %v411
        %v413 = vadd.f32 %v405, %v412
        %vm414 = vcmask 0
        %415 = vst.msk [vmem:[#allocation2] sm:$0x1] %vm414, %v413
        %v416 = vld [vmem:[#allocation2] sm:$0x1]
        %418 = vset.pattern.permute.xlu0 0
        %419 = vperm.xlu0 %418, %v416
        %v420 = vpop.permute.xlu0 %419
        %v422 = vlaneseq
        %v423 = vshrl.u32 %v422, 7
        %v424 = vsub.s32 0, %v423
        %v425 = vrot.slane %v420, %v424
        %426 = vst [vmem:[%s259] sm:$0x1] %v425
        %s427 = sand.u32 %s120, 1
        %s428 = scalar_lea.sflag [#allocation5], %s427
        %s429 = sand.u32 %s120, 1
        %s430 = scalar_lea.vmem [#allocation9], %s429
        // Predicated region
        $region49: #{tpu_custom_call.1} parent=31 // pred_check
          %p431 = pneg %p130
        $region50: #{tpu_custom_call.1} parent=31 // pred_check_branch
          %433 = sbr.rel (%p431) target = $region52
        $region51: #{tpu_custom_call.1} parent=31 // pred_region
          %s435 = ssub.s32 16, 16
          %436 = vsyncadd %s428, %s435
          %s437 = smul.addr %s27, 16
          %s438 = scalar_lea.hbm %s3, %s437
          %s440 = sshll.u32 %s430, 4
          %s441 = int_to_ptr.vmem [resolvable:$true] %s440
          %443 = dma.vmem_to_hbm [thread:$0]  %s441, 16, %s438, %s428
        $region52: #{tpu_custom_call.1} parent=31 // pred_fallthru
          _
      $region32: #{tpu_custom_call.1} parent=5 // pred_fallthru
        _
      %p444 = scmp.le.s32.totalorder 2, %s18
      // Predicated region
      $region53: #{tpu_custom_call.1} parent=5 // pred_check
        %p445 = pneg %p444
      $region54: #{tpu_custom_call.1} parent=5 // pred_check_branch
        %447 = sbr.rel (%p445) target = $region56
      $region55: #{tpu_custom_call.1} parent=5 // pred_region
        %s448 = ssub.s32 %s18, 2
        // Predicated region
        $region57: #{tpu_custom_call.1} parent=55 // pred_check
          %p449 = pneg %p136
        $region58: #{tpu_custom_call.1} parent=55 // pred_check_branch
          %451 = sbr.rel (%p449) target = $region60
        $region59: #{tpu_custom_call.1} parent=55 // pred_region
          %s452 = sand.u32 %s121, 1
          %s453 = scalar_lea.sflag [#allocation5], %s452
          %s454 = sand.u32 %s121, 1
          %s455 = scalar_lea.vmem [#allocation9], %s454
          %456 = dma.done %s453, 16
        $region60: #{tpu_custom_call.1} parent=55 // pred_fallthru
          _
      $region56: #{tpu_custom_call.1} parent=5 // pred_fallthru
        _
    $region6: #{tpu_custom_call.1} parent=1 // loop_footer
      %s22 = sadd.s32 1, %s18
    $region7: #{tpu_custom_call.1} parent=1 // loop_footer_branch
      %17 = sbr.rel target = $region3
    $region8: #{tpu_custom_call.1} parent=1 // loop_exit
      _
    %457 = vsyncpa [#allocation4], 1
    %s458 = scalar_lea.sflag [#allocation4], 1
    %459 = vsyncpa %s458, 1
    %460 = vsyncpa [#allocation7], 1
    %s461 = scalar_lea.sflag [#allocation7], 1
    %462 = vsyncpa %s461, 1
    %463 = vsyncpa [#allocation5], 1
    %s464 = scalar_lea.sflag [#allocation5], 1
    %465 = vsyncpa %s464, 1

</llo_original>
